<compile_context>
chip_gen: v7x
topology: tpu7x:2x2x1
jax: 0.10.0
libtpu: 0.0.40
codegen_flags: <defaults>
</compile_context>

<pallas_src>
import functools
import math

import jax
import jax.numpy as jnp
from jax.experimental import pallas as pl
from jax.experimental.pallas import tpu as pltpu


def _round_up(x, m):
    return (x + m - 1) // m * m


def _vmem_cap_bytes():
    """Physical-VMEM-aware cap for the scoped VMEM limit."""
    try:
        phys = int(pltpu.get_tpu_info().vmem_capacity_bytes)
    except Exception:
        phys = 64 * 1024 * 1024          # conservative fallback (v7x per-TC)
    return min(int(phys * 0.8), 100 * 1024 * 1024)


_VMEM_CAP = _vmem_cap_bytes()


# ---------------------------------------------------------------------------
# Kernel
# ---------------------------------------------------------------------------
def vae_kernel(h_ref, eps_ref, wenc_ref, benc_ref, wd_ref, bd_ref,
               dist_ref, kl_ref, *, tb, b_real, l_pad, mask_rows):
    h_in = h_ref[...]                        # (TB, D_pad)  matmul dtype
    eps = eps_ref[...].astype(jnp.float32)   # (TB, L_pad)  f32 for elementwise

    # Fused encoder: one (TB, D_pad) x (D_pad, 2*L_pad) MXU matmul, f32 acc.
    enc = jnp.dot(h_in, wenc_ref[...],
                  preferred_element_type=jnp.float32) + benc_ref[...]
    mean = enc[:, :l_pad]                    # lane-aligned slices
    logv = enc[:, l_pad:]

    # Reparameterization (f32).
    std = jnp.exp(0.5 * logv)
    z = eps * std + mean

    # Decoder matmul (cast z to the weight dtype for the MXU, f32 acc).
    rec = jnp.dot(z.astype(wd_ref.dtype), wd_ref[...],
                  preferred_element_type=jnp.float32) + bd_ref[...]

    # Per-row partial sums (lane reduction first; mask only the (TB,1) sums).
    # Padded latent lanes contribute exactly 0 (mean=0, logv=0, std=1) and
    # padded D lanes of rec and h are both 0, so no lane masking is needed.
    diff = rec - h_in.astype(jnp.float32)
    se_row = jnp.sum(diff * diff, axis=-1, keepdims=True)         # (TB, 1)
    # std*std == exp(logv): avoids a second EUP transcendental pass.
    kl_terms = 1.0 + logv - mean * mean - std * std
    kl_row = jnp.sum(kl_terms, axis=-1, keepdims=True)            # (TB, 1)

    if mask_rows:   # compiled in only when B was padded up to a tile multiple
        row = pl.program_id(0) * tb + jax.lax.broadcasted_iota(
            jnp.int32, (tb, 1), 0)
        rmask = (row < b_real).astype(jnp.float32)
        se_row = se_row * rmask
        kl_row = kl_row * rmask

    dist_ref[0, 0] = jnp.sum(se_row)
    kl_ref[0, 0] = jnp.sum(kl_row)


# ---------------------------------------------------------------------------
# One-time parameter packing (hoisted out of the per-call path)
# ---------------------------------------------------------------------------
def prepare_params(params, matmul_dtype=jnp.bfloat16):
    """Fuse the two encoder linears into one lane-padded (D_pad, 2*L_pad) slab,
    pad the decoder, and cast weights to the matmul dtype.  Call ONCE at init
    time (or whenever params change); do not rebuild per forward call."""
    wm, bm, wv, bv, wd, bd = params
    d, l = wm.shape
    d_pad = _round_up(d, 128)
    l_pad = _round_up(l, 128)

    wenc = jnp.zeros((d_pad, 2 * l_pad), jnp.float32)
    wenc = wenc.at[:d, :l].set(wm).at[:d, l_pad:l_pad + l].set(wv)
    benc = jnp.zeros((1, 2 * l_pad), jnp.float32)
    benc = benc.at[:, :l].set(bm).at[:, l_pad:l_pad + l].set(bv)
    wd_p = jnp.zeros((l_pad, d_pad), jnp.float32).at[:l, :d].set(wd)
    bd_p = jnp.zeros((1, d_pad), jnp.float32).at[:, :d].set(bd)

    # Weights in matmul dtype (bf16 = MXU-native on v6e/v7x, half the VMEM);
    # biases stay f32 (added to the f32 accumulator).
    return (wenc.astype(matmul_dtype), benc, wd_p.astype(matmul_dtype), bd_p)


def _pad_cast(x, rows, cols, dtype):
    """Cast to `dtype`; pad with zeros only when the shape actually needs it."""
    r, c = x.shape
    if r == rows and c == cols:
        return x if x.dtype == dtype else x.astype(dtype)
    return jnp.zeros((rows, cols), dtype).at[:r, :c].set(x.astype(dtype))


# ---------------------------------------------------------------------------
# Forward wrapper
# ---------------------------------------------------------------------------
@functools.partial(jax.jit, static_argnames=("batch_tile",))
def vae_forward(h, eps, prepared, *, batch_tile=256):
    """h: (B, input_dim); eps: (B, latent_dim) ~ N(0,1);
    prepared: output of prepare_params(params)."""
    wenc, benc, wd_p, bd_p = prepared
    b, d = h.shape
    d_pad, two_l_pad = wenc.shape
    l_pad = two_l_pad // 2
    mdt = wenc.dtype                        # matmul dtype (bf16 or f32)

    # Batch tile: multiple of 16, sized so the grid has >= 2 blocks whenever
    # B allows it (megacore on v7x), capped at batch_tile.
    tb = _round_up(min(batch_tile, _round_up((b + 1) // 2, 16)), 16)
    b_pad = _round_up(b, tb)
    grid = b_pad // tb
    mask_rows = b_pad != b

    # Activation tiles: cast to matmul dtype; pad only when needed.
    h_p = _pad_cast(h, b_pad, d_pad, mdt)
    eps_p = _pad_cast(eps, b_pad, l_pad, mdt)

    # Shape-aware VMEM budget: resident weights (assume double-buffered),
    # double-buffered activation tiles, f32 intermediates, 2x margin.
    it = wenc.dtype.itemsize
    bytes_w = 2 * (wenc.size * it + wd_p.size * it
                   + benc.size * benc.dtype.itemsize
                   + bd_p.size * bd_p.dtype.itemsize)
    bytes_act = 2 * 2 * (tb * d_pad + tb * l_pad) * it
    bytes_tmp = 10 * tb * max(d_pad, 2 * l_pad) * 4
    vmem_limit = int(min(max(2 * (bytes_w + bytes_act + bytes_tmp), 32 << 20),
                         _VMEM_CAP))

    kernel = functools.partial(vae_kernel, tb=tb, b_real=b, l_pad=l_pad,
                               mask_rows=mask_rows)

    smem_out = pl.BlockSpec((1, 1), lambda i: (i, 0),
                            memory_space=pltpu.MemorySpace.SMEM)

    dist_p, kl_p = pl.pallas_call(
        kernel,
        out_shape=(jax.ShapeDtypeStruct((grid, 1), jnp.float32),
                   jax.ShapeDtypeStruct((grid, 1), jnp.float32)),
        grid=(grid,),
        in_specs=[
            pl.BlockSpec((tb, d_pad), lambda i: (i, 0)),           # h tile
            pl.BlockSpec((tb, l_pad), lambda i: (i, 0)),           # eps tile
            pl.BlockSpec((d_pad, 2 * l_pad), lambda i: (0, 0)),    # fused enc W (resident)
            pl.BlockSpec((1, 2 * l_pad), lambda i: (0, 0)),        # fused enc b
            pl.BlockSpec((l_pad, d_pad), lambda i: (0, 0)),        # dec W (resident)
            pl.BlockSpec((1, d_pad), lambda i: (0, 0)),            # dec b
        ],
        out_specs=(smem_out, smem_out),
        compiler_params=pltpu.CompilerParams(
            dimension_semantics=("parallel",),   # independent partials -> megacore
            vmem_limit_bytes=vmem_limit,
        ),
    )(h_p, eps_p, wenc, benc, wd_p, bd_p)

    # Finalize reductions over grid blocks with the *real* B and D.
    # (Plain f32 partial sums: for B*D >= ~1e8 switch to per-block means.)
    dist = jnp.sum(dist_p) / (b * d)
    kl = -0.5 * jnp.sum(kl_p) / b
    return dist, kl


# ---------------------------------------------------------------------------
# Parameter init + pure-JAX reference
# ---------------------------------------------------------------------------
def init_params(key, input_dim, latent_dim):
    """Deterministic xavier-uniform weights, PyTorch-default uniform biases.
    Weights are stored already transposed: (in_features, out_features)."""
    ks = jax.random.split(key, 6)

    def xavier(k, fan_in, fan_out):
        bound = math.sqrt(6.0 / (fan_in + fan_out))
        return jax.random.uniform(k, (fan_in, fan_out), jnp.float32, -bound, bound)

    def bias(k, fan_in, n):
        bound = 1.0 / math.sqrt(fan_in)
        return jax.random.uniform(k, (1, n), jnp.float32, -bound, bound)

    wm = xavier(ks[0], input_dim, latent_dim)   # hidden2mean
    bm = bias(ks[1], input_dim, latent_dim)
    wv = xavier(ks[2], input_dim, latent_dim)   # hidden2logv
    bv = bias(ks[3], input_dim, latent_dim)
    wd = xavier(ks[4], latent_dim, input_dim)   # latent2hidden
    bd = bias(ks[5], latent_dim, input_dim)
    return wm, bm, wv, bv, wd, bd


def vae_reference(h, eps, params):
    wm, bm, wv, bv, wd, bd = params
    mean = h @ wm + bm
    logv = h @ wv + bv
    std = jnp.exp(0.5 * logv)
    z = eps * std + mean
    rec = z @ wd + bd
    kl = -0.5 * jnp.sum(1.0 + logv - mean ** 2 - jnp.exp(logv)) / h.shape[0]
    dist = jnp.mean((rec - h) ** 2)
    return dist, kl


if __name__ == "__main__":
    B, INPUT_DIM, LATENT_DIM = 8, 32, 16

    root = jax.random.PRNGKey(0)
    k_h, k_eps, k_p = jax.random.split(root, 3)

    h = jax.random.normal(k_h, (B, INPUT_DIM), jnp.float32)
    # torch.randn analogue (sampled in the wrapper, fed to the kernel).
    eps = jax.random.normal(k_eps, (B, LATENT_DIM), jnp.float32)
    params = init_params(k_p, INPUT_DIM, LATENT_DIM)

    ref_dist, ref_kl = vae_reference(h, eps, params)

    # f32 matmul path: tight parity against the pure-JAX reference.
    prepared_f32 = prepare_params(params, matmul_dtype=jnp.float32)
    d32, k32 = vae_forward(h, eps, prepared_f32)
    jax.block_until_ready((d32, k32))
    assert jnp.allclose(d32, ref_dist, rtol=1e-4, atol=1e-5), (d32, ref_dist)
    assert jnp.allclose(k32, ref_kl, rtol=1e-4, atol=1e-5), (k32, ref_kl)

    # bf16 MXU path (production default): f32 accumulation, loose tolerance.
    prepared_bf16 = prepare_params(params)      # bf16 matmul inputs
    d16, k16 = vae_forward(h, eps, prepared_bf16)
    jax.block_until_ready((d16, k16))
    assert jnp.allclose(d16, ref_dist, rtol=5e-2, atol=5e-2), (d16, ref_dist)
    assert jnp.allclose(k16, ref_kl, rtol=5e-2, atol=5e-2), (k16, ref_kl)

    print("KERNEL_OK")
</pallas_src>

<mosaic_0001>
module attributes {stable_mosaic.version = 11 : i64} {
  func.func @vae_kernel(%arg0: i32, %arg1: memref<16x128xf32, #tpu.memory_space<vmem>>, %arg2: memref<16x128xf32, #tpu.memory_space<vmem>>, %arg3: memref<128x256xf32, #tpu.memory_space<vmem>>, %arg4: memref<1x256xf32, #tpu.memory_space<vmem>>, %arg5: memref<128x128xf32, #tpu.memory_space<vmem>>, %arg6: memref<1x128xf32, #tpu.memory_space<vmem>>, %arg7: memref<1x1xf32, #tpu.memory_space<smem>>, %arg8: memref<1x1xf32, #tpu.memory_space<smem>>) attributes {dimension_semantics = [#tpu.dimension_semantics<parallel>], iteration_bounds = array<i64: 1>, scalar_prefetch = 0 : i64, scratch_operands = 0 : i64, tpu.core_type = #tpu.core_type<tc>, window_params = [{transform_indices = @transform_0, window_bounds = array<i64: 16, 128>}, {transform_indices = @transform_1, window_bounds = array<i64: 16, 128>}, {pipeline_mode = #tpu.pipeline_mode<synchronous>, transform_indices = @transform_2, window_bounds = array<i64: 128, 256>}, {pipeline_mode = #tpu.pipeline_mode<synchronous>, transform_indices = @transform_3, window_bounds = array<i64: 1, 256>}, {pipeline_mode = #tpu.pipeline_mode<synchronous>, transform_indices = @transform_4, window_bounds = array<i64: 128, 128>}, {pipeline_mode = #tpu.pipeline_mode<synchronous>, transform_indices = @transform_5, window_bounds = array<i64: 1, 128>}, {transform_indices = @transform_6, window_bounds = array<i64: 1, 1>}, {transform_indices = @transform_7, window_bounds = array<i64: 1, 1>}]} {
    %c0 = arith.constant 0 : index
    %c0_0 = arith.constant 0 : index
    %0 = vector.load %arg1[%c0, %c0_0] : memref<16x128xf32, #tpu.memory_space<vmem>>, vector<16x128xf32>
    %c0_1 = arith.constant 0 : index
    %c0_2 = arith.constant 0 : index
    %1 = vector.load %arg2[%c0_1, %c0_2] : memref<16x128xf32, #tpu.memory_space<vmem>>, vector<16x128xf32>
    %c0_3 = arith.constant 0 : index
    %c0_4 = arith.constant 0 : index
    %2 = vector.load %arg3[%c0_3, %c0_4] : memref<128x256xf32, #tpu.memory_space<vmem>>, vector<128x256xf32>
    %cst = arith.constant dense<0.000000e+00> : vector<16x256xf32>
    %3 = tpu.matmul %0, %2, %cst {dimension_numbers = #tpu.dot_dimension_numbers<[1], [0], [0], [1], [0, 0, 1, 1], [], []>} : vector<16x128xf32>, vector<128x256xf32>, vector<16x256xf32> -> vector<16x256xf32>
    %c0_5 = arith.constant 0 : index
    %c0_6 = arith.constant 0 : index
    %4 = vector.load %arg4[%c0_5, %c0_6] : memref<1x256xf32, #tpu.memory_space<vmem>>, vector<1x256xf32>
    %5 = vector.broadcast %4 : vector<1x256xf32> to vector<16x256xf32>
    %6 = arith.addf %3, %5 : vector<16x256xf32>
    %7 = vector.extract_strided_slice %6 {offsets = [0, 0], sizes = [16, 128], strides = [1, 1]} : vector<16x256xf32> to vector<16x128xf32>
    %8 = vector.extract_strided_slice %6 {offsets = [0, 128], sizes = [16, 128], strides = [1, 1]} : vector<16x256xf32> to vector<16x128xf32>
    %cst_7 = arith.constant 5.000000e-01 : f32
    %9 = vector.broadcast %cst_7 : f32 to vector<16x128xf32>
    %10 = arith.mulf %9, %8 : vector<16x128xf32>
    %11 = math.exp %10 : vector<16x128xf32>
    %12 = arith.mulf %1, %11 : vector<16x128xf32>
    %13 = arith.addf %12, %7 : vector<16x128xf32>
    %c0_8 = arith.constant 0 : index
    %c0_9 = arith.constant 0 : index
    %14 = vector.load %arg5[%c0_8, %c0_9] : memref<128x128xf32, #tpu.memory_space<vmem>>, vector<128x128xf32>
    %cst_10 = arith.constant dense<0.000000e+00> : vector<16x128xf32>
    %15 = tpu.matmul %13, %14, %cst_10 {dimension_numbers = #tpu.dot_dimension_numbers<[1], [0], [0], [1], [0, 0, 1, 1], [], []>} : vector<16x128xf32>, vector<128x128xf32>, vector<16x128xf32> -> vector<16x128xf32>
    %c0_11 = arith.constant 0 : index
    %c0_12 = arith.constant 0 : index
    %16 = vector.load %arg6[%c0_11, %c0_12] : memref<1x128xf32, #tpu.memory_space<vmem>>, vector<1x128xf32>
    %17 = vector.broadcast %16 : vector<1x128xf32> to vector<16x128xf32>
    %18 = arith.addf %15, %17 : vector<16x128xf32>
    %19 = arith.subf %18, %0 : vector<16x128xf32>
    %20 = arith.mulf %19, %19 : vector<16x128xf32>
    %cst_13 = arith.constant dense<0.000000e+00> : vector<16xf32>
    %21 = vector.multi_reduction <add>, %20, %cst_13 [1] : vector<16x128xf32> to vector<16xf32>
    %22 = vector.shape_cast %21 : vector<16xf32> to vector<16x1xf32>
    %cst_14 = arith.constant 1.000000e+00 : f32
    %23 = vector.broadcast %cst_14 : f32 to vector<16x128xf32>
    %24 = arith.addf %23, %8 : vector<16x128xf32>
    %25 = arith.mulf %7, %7 : vector<16x128xf32>
    %26 = arith.subf %24, %25 : vector<16x128xf32>
    %27 = arith.mulf %11, %11 : vector<16x128xf32>
    %28 = arith.subf %26, %27 : vector<16x128xf32>
    %cst_15 = arith.constant dense<0.000000e+00> : vector<16xf32>
    %29 = vector.multi_reduction <add>, %28, %cst_15 [1] : vector<16x128xf32> to vector<16xf32>
    %30 = vector.shape_cast %29 : vector<16xf32> to vector<16x1xf32>
    %c16_i32 = arith.constant 16 : i32
    %31 = arith.muli %arg0, %c16_i32 : i32
    %32 = tpu.iota {dimensions = array<i32: 0>} : vector<16x1xi32>
    %33 = vector.broadcast %31 : i32 to vector<16x1xi32>
    %34 = arith.addi %33, %32 : vector<16x1xi32>
    %c8_i32 = arith.constant 8 : i32
    %35 = vector.broadcast %c8_i32 : i32 to vector<16x1xi32>
    %36 = arith.cmpi slt, %34, %35 : vector<16x1xi32>
    %37 = arith.extui %36 : vector<16x1xi1> to vector<16x1xi32>
    %38 = arith.sitofp %37 : vector<16x1xi32> to vector<16x1xf32>
    %39 = arith.mulf %22, %38 : vector<16x1xf32>
    %40 = arith.mulf %30, %38 : vector<16x1xf32>
    %41 = vector.shape_cast %39 : vector<16x1xf32> to vector<1x16x1xf32>
    %cst_16 = arith.constant dense<0.000000e+00> : vector<1xf32>
    %42 = vector.multi_reduction <add>, %41, %cst_16 [1, 2] : vector<1x16x1xf32> to vector<1xf32>
    %43 = vector.shape_cast %42 : vector<1xf32> to vector<1x1x1xf32>
    %44 = vector.extract %43[0, 0, 0] : f32 from vector<1x1x1xf32>
    %c0_17 = arith.constant 0 : index
    %c0_18 = arith.constant 0 : index
    %45 = memref.load %arg7[%c0_17, %c0_18] : memref<1x1xf32, #tpu.memory_space<smem>>
    memref.store %44, %arg7[%c0_17, %c0_18] : memref<1x1xf32, #tpu.memory_space<smem>>
    %46 = vector.shape_cast %40 : vector<16x1xf32> to vector<1x16x1xf32>
    %cst_19 = arith.constant dense<0.000000e+00> : vector<1xf32>
    %47 = vector.multi_reduction <add>, %46, %cst_19 [1, 2] : vector<1x16x1xf32> to vector<1xf32>
    %48 = vector.shape_cast %47 : vector<1xf32> to vector<1x1x1xf32>
    %49 = vector.extract %48[0, 0, 0] : f32 from vector<1x1x1xf32>
    %c0_20 = arith.constant 0 : index
    %c0_21 = arith.constant 0 : index
    %50 = memref.load %arg8[%c0_20, %c0_21] : memref<1x1xf32, #tpu.memory_space<smem>>
    memref.store %49, %arg8[%c0_20, %c0_21] : memref<1x1xf32, #tpu.memory_space<smem>>
    return
  }
  func.func @transform_0(%arg0: i32) -> (i32, i32) {
    %c0_i32 = arith.constant 0 : i32
    %c0_i32_0 = arith.constant 0 : i32
    return %arg0, %c0_i32 : i32, i32
  }
  func.func @transform_1(%arg0: i32) -> (i32, i32) {
    %c0_i32 = arith.constant 0 : i32
    %c0_i32_0 = arith.constant 0 : i32
    return %arg0, %c0_i32 : i32, i32
  }
  func.func @transform_2(%arg0: i32) -> (i32, i32) {
    %c0_i32 = arith.constant 0 : i32
    %c0_i32_0 = arith.constant 0 : i32
    %c0_i32_1 = arith.constant 0 : i32
    return %c0_i32, %c0_i32_0 : i32, i32
  }
  func.func @transform_3(%arg0: i32) -> (i32, i32) {
    %c0_i32 = arith.constant 0 : i32
    %c0_i32_0 = arith.constant 0 : i32
    %c0_i32_1 = arith.constant 0 : i32
    return %c0_i32, %c0_i32_0 : i32, i32
  }
  func.func @transform_4(%arg0: i32) -> (i32, i32) {
    %c0_i32 = arith.constant 0 : i32
    %c0_i32_0 = arith.constant 0 : i32
    %c0_i32_1 = arith.constant 0 : i32
    return %c0_i32, %c0_i32_0 : i32, i32
  }
  func.func @transform_5(%arg0: i32) -> (i32, i32) {
    %c0_i32 = arith.constant 0 : i32
    %c0_i32_0 = arith.constant 0 : i32
    %c0_i32_1 = arith.constant 0 : i32
    return %c0_i32, %c0_i32_0 : i32, i32
  }
  func.func @transform_6(%arg0: i32) -> (i32, i32) {
    %c0_i32 = arith.constant 0 : i32
    %c0_i32_0 = arith.constant 0 : i32
    return %arg0, %c0_i32 : i32, i32
  }
  func.func @transform_7(%arg0: i32) -> (i32, i32) {
    %c0_i32 = arith.constant 0 : i32
    %c0_i32_0 = arith.constant 0 : i32
    return %arg0, %c0_i32 : i32, i32
  }
}

</mosaic_0001>

<llo_original>
// kernel: vae_forward.1
$region0: #{vae_forward.1}
  #allocation0 [shape = 'u32[]', space=smem, size = 0x4, offset = 0x4, fixed_abs, tag = 'smem constant byte address 0x4 - core index']
  #allocation1 [shape = 'u32[144,128]{1,0:T(1,128)}', space=vmem, size = 0x12000, scoped, tag = 'internal scratch']
  %s0 = inlined_call_operand.vmem [shape: f32[16,128], index: 0, kind: input, shape index: {}]
  %s1 = inlined_call_operand.vmem [shape: f32[16,128], index: 1, kind: input, shape index: {}]
  %s2 = inlined_call_operand.hbm [shape: f32[128,256], index: 2, kind: input, shape index: {}]
  %s3 = inlined_call_operand.vmem [shape: f32[1,256], index: 3, kind: input, shape index: {}]
  %s4 = inlined_call_operand.hbm [shape: f32[128,128], index: 4, kind: input, shape index: {}]
  %s5 = inlined_call_operand.vmem [shape: f32[1,128], index: 5, kind: input, shape index: {}]
  %s6 = inlined_call_operand.hbm [shape: f32[1,1], index: 6, kind: output, shape index: {0}]
  %s7 = inlined_call_operand.hbm [shape: f32[1,1], index: 7, kind: output, shape index: {1}]
  %8 = xla_tuple %s6, %s7
  %s9 = sld [smem:[#allocation0]]
  $region50: #{vae_forward.1} parent=0
    _
  %s11 = ssub.s32 1, %s9
  %s12 = scalar_select 0, %s11, %s9
  $region1: #{vae_forward.1} parent=0
    #allocation2 [shape = 'u8[131072]{0}', space=vmem, size = 0x20000, scoped, tag = 'input window, operand 2, single buffered']
    #allocation3 [shape = 's32[1]{0}', space=sflag, size = 0x4, scoped, tag = 'scoped memory for vae_forward.1']
    #allocation4 [shape = 's32[1]{0}', space=sflag, size = 0x4, scoped, tag = 'scoped memory for vae_forward.1']
    #allocation5 [shape = 'u8[65536]{0}', space=vmem, size = 0x10000, scoped, tag = 'input window, operand 4, single buffered']
    #allocation6 [shape = 's32[1]{0}', space=sflag, size = 0x4, scoped, tag = 'scoped memory for vae_forward.1']
    #allocation7 [shape = 'u8[512]{0}', space=smem, size = 0x200, scoped, tag = 'output window, operand 0, single buffered']
    #allocation8 [shape = 'u8[512]{0}', space=smem, size = 0x200, scoped, tag = 'output window, operand 1, single buffered']
    #allocation9 [shape = 's32[1]{0}', space=sflag, size = 0x4, scoped, tag = 'scoped memory for vae_forward.1']
    %13 = vsyncpa [#allocation3], 0
    %14 = vsyncpa [#allocation6], 0
    %15 = vsyncpa [#allocation4], 0
    %16 = vsyncpa [#allocation9], 0
    // Predicated region
    $region2: #{vae_forward.1} parent=1 // pred_check
      _
    $region3: #{vae_forward.1} parent=1 // pred_check_branch
      %18 = sbr.rel (0) target = $region5
    $region4: #{vae_forward.1} parent=1 // pred_region
      _
    $region5: #{vae_forward.1} parent=1 // pred_fallthru
      _
    // Predicated region
    $region6: #{vae_forward.1} parent=1 // pred_check
      _
    $region7: #{vae_forward.1} parent=1 // pred_check_branch
      %20 = sbr.rel (0) target = $region9
    $region8: #{vae_forward.1} parent=1 // pred_region
      _
    $region9: #{vae_forward.1} parent=1 // pred_fallthru
      _
    // Predicated region
    $region10: #{vae_forward.1} parent=1 // pred_check
      _
    $region11: #{vae_forward.1} parent=1 // pred_check_branch
      %22 = sbr.rel (0) target = $region13
    $region12: #{vae_forward.1} parent=1 // pred_region
      %s24 = ssub.s32 4096, 4096
      %25 = vsyncadd [#allocation3], %s24
      %s26 = sshll.u32 [#allocation2], 4
      %s27 = int_to_ptr.vmem [resolvable:$true] %s26
      %32 = dma.hbm_to_vmem [thread:$0]  %s2, 4096, %s27, [#allocation3], 256, 256, 16
    $region13: #{vae_forward.1} parent=1 // pred_fallthru
      _
    // Predicated region
    $region14: #{vae_forward.1} parent=1 // pred_check
      _
    $region15: #{vae_forward.1} parent=1 // pred_check_branch
      %34 = sbr.rel (0) target = $region17
    $region16: #{vae_forward.1} parent=1 // pred_region
      _
    $region17: #{vae_forward.1} parent=1 // pred_fallthru
      _
    // Predicated region
    $region18: #{vae_forward.1} parent=1 // pred_check
      _
    $region19: #{vae_forward.1} parent=1 // pred_check_branch
      %36 = sbr.rel (0) target = $region21
    $region20: #{vae_forward.1} parent=1 // pred_region
      %s38 = ssub.s32 2048, 2048
      %39 = vsyncadd [#allocation6], %s38
      %s40 = sshll.u32 [#allocation5], 4
      %s41 = int_to_ptr.vmem [resolvable:$true] %s40
      %46 = dma.hbm_to_vmem [thread:$0]  %s4, 2048, %s41, [#allocation6], 128, 128, 8
    $region21: #{vae_forward.1} parent=1 // pred_fallthru
      _
    // Predicated region
    $region22: #{vae_forward.1} parent=1 // pred_check
      _
    $region23: #{vae_forward.1} parent=1 // pred_check_branch
      %48 = sbr.rel (0) target = $region25
    $region24: #{vae_forward.1} parent=1 // pred_region
      _
    $region25: #{vae_forward.1} parent=1 // pred_fallthru
      _
    // Predicated region
    $region26: #{vae_forward.1} parent=1 // pred_check
      _
    $region27: #{vae_forward.1} parent=1 // pred_check_branch
      %50 = sbr.rel (0) target = $region29
    $region28: #{vae_forward.1} parent=1 // pred_region
      %51 = dma.done [#allocation3], 4096
    $region29: #{vae_forward.1} parent=1 // pred_fallthru
      _
    // Predicated region
    $region30: #{vae_forward.1} parent=1 // pred_check
      _
    $region31: #{vae_forward.1} parent=1 // pred_check_branch
      %53 = sbr.rel (0) target = $region33
    $region32: #{vae_forward.1} parent=1 // pred_region
      %54 = dma.done [#allocation6], 2048
    $region33: #{vae_forward.1} parent=1 // pred_fallthru
      _
    %v55 = vld [vmem:[%s0] sm:$0xff]
    %v56 = vld [vmem:[%s0 + $0x8] sm:$0xff]
    %v57 = vld [vmem:[%s1] sm:$0xff]
    %v58 = vld [vmem:[%s1 + $0x8] sm:$0xff]
    %v59 = vld [vmem:[#allocation2] sm:$0xff]
    %v60 = vld [vmem:[#allocation2 + $0x8] sm:$0xff]
    %v61 = vld [vmem:[#allocation2 + $0x10] sm:$0xff]
    %v62 = vld [vmem:[#allocation2 + $0x18] sm:$0xff]
    %v63 = vld [vmem:[#allocation2 + $0x20] sm:$0xff]
    %v64 = vld [vmem:[#allocation2 + $0x28] sm:$0xff]
    %v65 = vld [vmem:[#allocation2 + $0x30] sm:$0xff]
    %v66 = vld [vmem:[#allocation2 + $0x38] sm:$0xff]
    %v67 = vld [vmem:[#allocation2 + $0x40] sm:$0xff]
    %v68 = vld [vmem:[#allocation2 + $0x48] sm:$0xff]
    %v69 = vld [vmem:[#allocation2 + $0x50] sm:$0xff]
    %v70 = vld [vmem:[#allocation2 + $0x58] sm:$0xff]
    %v71 = vld [vmem:[#allocation2 + $0x60] sm:$0xff]
    %v72 = vld [vmem:[#allocation2 + $0x68] sm:$0xff]
    %v73 = vld [vmem:[#allocation2 + $0x70] sm:$0xff]
    %v74 = vld [vmem:[#allocation2 + $0x78] sm:$0xff]
    %v75 = vld [vmem:[#allocation2 + $0x80] sm:$0xff]
    %v76 = vld [vmem:[#allocation2 + $0x88] sm:$0xff]
    %v77 = vld [vmem:[#allocation2 + $0x90] sm:$0xff]
    %v78 = vld [vmem:[#allocation2 + $0x98] sm:$0xff]
    %v79 = vld [vmem:[#allocation2 + $0xa0] sm:$0xff]
    %v80 = vld [vmem:[#allocation2 + $0xa8] sm:$0xff]
    %v81 = vld [vmem:[#allocation2 + $0xb0] sm:$0xff]
    %v82 = vld [vmem:[#allocation2 + $0xb8] sm:$0xff]
    %v83 = vld [vmem:[#allocation2 + $0xc0] sm:$0xff]
    %v84 = vld [vmem:[#allocation2 + $0xc8] sm:$0xff]
    %v85 = vld [vmem:[#allocation2 + $0xd0] sm:$0xff]
    %v86 = vld [vmem:[#allocation2 + $0xd8] sm:$0xff]
    %v87 = vld [vmem:[#allocation2 + $0xe0] sm:$0xff]
    %v88 = vld [vmem:[#allocation2 + $0xe8] sm:$0xff]
    %v89 = vld [vmem:[#allocation2 + $0xf0] sm:$0xff]
    %v90 = vld [vmem:[#allocation2 + $0xf8] sm:$0xff]
    %v91 = vld [vmem:[%s3] sm:$0x3]
    %v93 = vlaneseq
    %v94 = vshrl.u32 %v93, 7
    %v95 = vsub.s32 0, %v94
    %v96 = vrot.slane %v91, %v95
    %v97 = vlaneseq
    %v98 = vshrl.u32 %v97, 7
    %v99 = vsub.s32 1, %v98
    %v100 = vrot.slane %v91, %v99
    %103 = vmatprep.subr.mxu0 %v60
    %104 = vmatpush1.msra.mxu0 %v59
    %105 = vmatprep.subr.mxu0 %v62
    %106 = vmatpush1.msra.mxu0 %v61
    %107 = vmatprep.subr.mxu0 %v64
    %108 = vmatpush1.msra.mxu0 %v63
    %109 = vmatprep.subr.mxu0 %v66
    %110 = vmatpush1.msra.mxu0 %v65
    %111 = vmatprep.subr.mxu0 %v68
    %112 = vmatpush1.msra.mxu0 %v67
    %113 = vmatprep.subr.mxu0 %v70
    %114 = vmatpush1.msra.mxu0 %v69
    %115 = vmatprep.subr.mxu0 %v72
    %116 = vmatpush1.msra.mxu0 %v71
    %117 = vmatprep.subr.mxu0 %v74
    %118 = vmatpush1.msra.mxu0 %v73
    %119 = vmatprep.subr.mxu0 %v76
    %120 = vmatpush1.msra.mxu0 %v75
    %121 = vmatprep.subr.mxu0 %v78
    %122 = vmatpush1.msra.mxu0 %v77
    %123 = vmatprep.subr.mxu0 %v80
    %124 = vmatpush1.msra.mxu0 %v79
    %125 = vmatprep.subr.mxu0 %v82
    %126 = vmatpush1.msra.mxu0 %v81
    %127 = vmatprep.subr.mxu0 %v84
    %128 = vmatpush1.msra.mxu0 %v83
    %129 = vmatprep.subr.mxu0 %v86
    %130 = vmatpush1.msra.mxu0 %v85
    %131 = vmatprep.subr.mxu0 %v88
    %132 = vmatpush1.msra.mxu0 %v87
    %133 = vmatprep.subr.mxu0 %v90
    %134 = vmatpush1.msra.mxu0 %v89
    %135 = vmatprep.subr.mxu0 0.0
    %136 = vmatpush1.msra.mxu0 0.0
    %137 = vmatprep.subr.mxu0 0.0
    %138 = vmatpush1.msra.mxu0 0.0
    %139 = vmatprep.subr.mxu0 0.0
    %140 = vmatpush1.msra.mxu0 0.0
    %141 = vmatprep.subr.mxu0 0.0
    %142 = vmatpush1.msra.mxu0 0.0
    %143 = vmatprep.subr.mxu0 0.0
    %144 = vmatpush1.msra.mxu0 0.0
    %145 = vmatprep.subr.mxu0 0.0
    %146 = vmatpush1.msra.mxu0 0.0
    %147 = vmatprep.subr.mxu0 0.0
    %148 = vmatpush1.msra.mxu0 0.0
    %149 = vmatprep.subr.mxu0 0.0
    %150 = vmatpush1.msra.mxu0 0.0
    %151 = vmatprep.subr.mxu0 0.0
    %152 = vmatpush1.msra.mxu0 0.0
    %153 = vmatprep.subr.mxu0 0.0
    %154 = vmatpush1.msra.mxu0 0.0
    %155 = vmatprep.subr.mxu0 0.0
    %156 = vmatpush1.msra.mxu0 0.0
    %157 = vmatprep.subr.mxu0 0.0
    %158 = vmatpush1.msra.mxu0 0.0
    %159 = vmatprep.subr.mxu0 0.0
    %160 = vmatpush1.msra.mxu0 0.0
    %161 = vmatprep.subr.mxu0 0.0
    %162 = vmatpush1.msra.mxu0 0.0
    %163 = vmatprep.subr.mxu0 0.0
    %164 = vmatpush1.msra.mxu0 0.0
    %165 = vmatprep.subr.mxu0 0.0
    %166 = vmatpush1.msra.mxu0 0.0
    %167 = vmatprep.mubr.f32.mxu0 0.0
    %168 = vmatmul.mubr.f32.gmra.mrb[0].mxu0 %v55
    %v169 = vpop.f32.mrb[0].mxu0
    %v170 = vadd.f32 %v96, %v169
    %v171 = vpop.f32.mrb[0].mxu0
    %v172 = vadd.f32 %v100, %v171
    %173 = vmatprep.mubr.f32.mxu0 0.0
    %174 = vmatmul.mubr.f32.gmra.mrb[0].mxu0 %v56
    %v175 = vpop.f32.mrb[0].mxu0
    %v176 = vadd.f32 %v96, %v175
    %v177 = vpop.f32.mrb[0].mxu0
    %v178 = vadd.f32 %v100, %v177
    %179 = vdwg.mxu0
    %v180 = vmul.f32 %v172, 0.5
    %v181 = vmul.f32 %v178, 0.5
    %v182 = vmul.f32 %v180, 1.442695
    %v183 = vpow.pop %v182
    %v184 = vmul.f32 %v181, 1.442695
    %v185 = vpow.pop %v184
    %v186 = vmul.f32 %v57, %v183
    %v187 = vmul.f32 %v58, %v185
    %v188 = vadd.f32 %v186, %v170
    %v189 = vadd.f32 %v187, %v176
    %v190 = vld [vmem:[#allocation5] sm:$0xff]
    %v191 = vld [vmem:[#allocation5 + $0x8] sm:$0xff]
    %v192 = vld [vmem:[#allocation5 + $0x10] sm:$0xff]
    %v193 = vld [vmem:[#allocation5 + $0x18] sm:$0xff]
    %v194 = vld [vmem:[#allocation5 + $0x20] sm:$0xff]
    %v195 = vld [vmem:[#allocation5 + $0x28] sm:$0xff]
    %v196 = vld [vmem:[#allocation5 + $0x30] sm:$0xff]
    %v197 = vld [vmem:[#allocation5 + $0x38] sm:$0xff]
    %v198 = vld [vmem:[#allocation5 + $0x40] sm:$0xff]
    %v199 = vld [vmem:[#allocation5 + $0x48] sm:$0xff]
    %v200 = vld [vmem:[#allocation5 + $0x50] sm:$0xff]
    %v201 = vld [vmem:[#allocation5 + $0x58] sm:$0xff]
    %v202 = vld [vmem:[#allocation5 + $0x60] sm:$0xff]
    %v203 = vld [vmem:[#allocation5 + $0x68] sm:$0xff]
    %v204 = vld [vmem:[#allocation5 + $0x70] sm:$0xff]
    %v205 = vld [vmem:[#allocation5 + $0x78] sm:$0xff]
    %v206 = vld [vmem:[%s5] sm:$0x1]
    %v208 = vlaneseq
    %v209 = vshrl.u32 %v208, 7
    %v210 = vsub.s32 0, %v209
    %v211 = vrot.slane %v206, %v210
    %213 = vmatprep.subr.mxu0 0.0
    %214 = vmatpush1.msra.mxu0 %v190
    %215 = vmatprep.subr.mxu0 0.0
    %216 = vmatpush1.msra.mxu0 %v191
    %217 = vmatprep.subr.mxu0 0.0
    %218 = vmatpush1.msra.mxu0 %v192
    %219 = vmatprep.subr.mxu0 0.0
    %220 = vmatpush1.msra.mxu0 %v193
    %221 = vmatprep.subr.mxu0 0.0
    %222 = vmatpush1.msra.mxu0 %v194
    %223 = vmatprep.subr.mxu0 0.0
    %224 = vmatpush1.msra.mxu0 %v195
    %225 = vmatprep.subr.mxu0 0.0
    %226 = vmatpush1.msra.mxu0 %v196
    %227 = vmatprep.subr.mxu0 0.0
    %228 = vmatpush1.msra.mxu0 %v197
    %229 = vmatprep.subr.mxu0 0.0
    %230 = vmatpush1.msra.mxu0 %v198
    %231 = vmatprep.subr.mxu0 0.0
    %232 = vmatpush1.msra.mxu0 %v199
    %233 = vmatprep.subr.mxu0 0.0
    %234 = vmatpush1.msra.mxu0 %v200
    %235 = vmatprep.subr.mxu0 0.0
    %236 = vmatpush1.msra.mxu0 %v201
    %237 = vmatprep.subr.mxu0 0.0
    %238 = vmatpush1.msra.mxu0 %v202
    %239 = vmatprep.subr.mxu0 0.0
    %240 = vmatpush1.msra.mxu0 %v203
    %241 = vmatprep.subr.mxu0 0.0
    %242 = vmatpush1.msra.mxu0 %v204
    %243 = vmatprep.subr.mxu0 0.0
    %244 = vmatpush1.msra.mxu0 %v205
    %245 = vmatprep.subr.mxu0 0.0
    %246 = vmatpush1.msra.mxu0 0.0
    %247 = vmatprep.subr.mxu0 0.0
    %248 = vmatpush1.msra.mxu0 0.0
    %249 = vmatprep.subr.mxu0 0.0
    %250 = vmatpush1.msra.mxu0 0.0
    %251 = vmatprep.subr.mxu0 0.0
    %252 = vmatpush1.msra.mxu0 0.0
    %253 = vmatprep.subr.mxu0 0.0
    %254 = vmatpush1.msra.mxu0 0.0
    %255 = vmatprep.subr.mxu0 0.0
    %256 = vmatpush1.msra.mxu0 0.0
    %257 = vmatprep.subr.mxu0 0.0
    %258 = vmatpush1.msra.mxu0 0.0
    %259 = vmatprep.subr.mxu0 0.0
    %260 = vmatpush1.msra.mxu0 0.0
    %261 = vmatprep.subr.mxu0 0.0
    %262 = vmatpush1.msra.mxu0 0.0
    %263 = vmatprep.subr.mxu0 0.0
    %264 = vmatpush1.msra.mxu0 0.0
    %265 = vmatprep.subr.mxu0 0.0
    %266 = vmatpush1.msra.mxu0 0.0
    %267 = vmatprep.subr.mxu0 0.0
    %268 = vmatpush1.msra.mxu0 0.0
    %269 = vmatprep.subr.mxu0 0.0
    %270 = vmatpush1.msra.mxu0 0.0
    %271 = vmatprep.subr.mxu0 0.0
    %272 = vmatpush1.msra.mxu0 0.0
    %273 = vmatprep.subr.mxu0 0.0
    %274 = vmatpush1.msra.mxu0 0.0
    %275 = vmatprep.subr.mxu0 0.0
    %276 = vmatpush1.msra.mxu0 0.0
    %277 = vmatprep.mubr.f32.mxu0 0.0
    %278 = vmatmul.mubr.f32.gmra.mrb[0].mxu0 %v188
    %v279 = vpop.f32.mrb[0].mxu0
    %v280 = vadd.f32 %v211, %v279
    %v281 = vpop.f32.mrb[0].mxu0
    %282 = vmatprep.mubr.f32.mxu0 0.0
    %283 = vmatmul.mubr.f32.gmra.mrb[0].mxu0 %v189
    %v284 = vpop.f32.mrb[0].mxu0
    %v285 = vadd.f32 %v211, %v284
    %v286 = vpop.f32.mrb[0].mxu0
    %287 = vdwg.mxu0
    %v288 = vsub.f32 %v280, %v55
    %v289 = vsub.f32 %v285, %v56
    %v290 = vmul.f32 %v288, %v288
    %v291 = vmul.f32 %v289, %v289
    %292 = vadd.xlane.f32.xlu0 %v290
    %v293 = vpop.xlane.xlu0 %292
    %294 = vadd.xlane.f32.xlu0 %v291
    %v295 = vpop.xlane.xlu0 %294
    %v296 = vadd.f32 %v172, 1.0
    %v297 = vadd.f32 %v178, 1.0
    %v298 = vmul.f32 %v170, %v170
    %v299 = vmul.f32 %v176, %v176
    %v300 = vsub.f32 %v296, %v298
    %v301 = vsub.f32 %v297, %v299
    %v302 = vmul.f32 %v183, %v183
    %v303 = vmul.f32 %v185, %v185
    %v304 = vsub.f32 %v300, %v302
    %v305 = vsub.f32 %v301, %v303
    %306 = vadd.xlane.f32.xlu0 %v304
    %v307 = vpop.xlane.xlu0 %306
    %308 = vadd.xlane.f32.xlu0 %v305
    %v309 = vpop.xlane.xlu0 %308
    %s310 = smul.u32 0, 16
    %v311 = vlaneseq
    %v312 = vshrl.u32 %v311, 7
    %v313 = vadd.s32 %v312, 8
    %v314 = vstv %s310
    %v315 = vadd.s32 %v314, %v312
    %v316 = vadd.s32 %v314, %v313
    %vm317 = vcmp.lt.s32.totalorder %v315, 8
    %vm318 = vcmp.lt.s32.totalorder %v316, 8
    %v319 = vsel %vm317, 1, 0
    %v320 = vsel %vm318, 1, 0
    %v321 = vcvt.s32.f32 %v319
    %v322 = vcvt.s32.f32 %v320
    %v323 = vmul.f32 %v293, %v321
    %v324 = vmul.f32 %v295, %v322
    %v325 = vmul.f32 %v307, %v321
    %v326 = vmul.f32 %v309, %v322
    %vm327 = vcmask 7168
    %v328 = vsel %vm327, %v323, 0.0
    %v329 = vsel %vm327, %v324, 0.0
    %v330 = vadd.f32 %v328, %v329
    %331 = vadd.xlane.f32.xlu0 %v330
    %v332 = vpop.xlane.xlu0 %331
    %v333 = vrot.slane %v332, 4
    %v334 = vadd.f32 %v332, %v333
    %v335 = vrot.slane %v334, 2
    %v336 = vadd.f32 %v334, %v335
    %v337 = vrot.slane %v336, 1
    %v338 = vadd.f32 %v336, %v337
    %s339 = vtos %v338
    %s340 = scalar_lea.smem [#allocation7], 0
    %341 = sst [smem:[%s340]] %s339
    %v342 = vsel %vm327, %v325, 0.0
    %v343 = vsel %vm327, %v326, 0.0
    %v344 = vadd.f32 %v342, %v343
    %345 = vadd.xlane.f32.xlu0 %v344
    %v346 = vpop.xlane.xlu0 %345
    %v347 = vrot.slane %v346, 4
    %v348 = vadd.f32 %v346, %v347
    %v349 = vrot.slane %v348, 2
    %v350 = vadd.f32 %v348, %v349
    %v351 = vrot.slane %v350, 1
    %v352 = vadd.f32 %v350, %v351
    %s353 = vtos %v352
    %s354 = scalar_lea.smem [#allocation8], 0
    %355 = sst [smem:[%s354]] %s353
    // Predicated region
    $region34: #{vae_forward.1} parent=1 // pred_check
      _
    $region35: #{vae_forward.1} parent=1 // pred_check_branch
      %357 = sbr.rel (0) target = $region37
    $region36: #{vae_forward.1} parent=1 // pred_region
      %s359 = ssub.s32 16, 16
      %360 = vsyncadd [#allocation4], %s359
      %363 = dma.smem_to_hbm [#allocation7], 16, %s6, [#allocation4]
    $region37: #{vae_forward.1} parent=1 // pred_fallthru
      _
    // Predicated region
    $region38: #{vae_forward.1} parent=1 // pred_check
      _
    $region39: #{vae_forward.1} parent=1 // pred_check_branch
      %365 = sbr.rel (0) target = $region41
    $region40: #{vae_forward.1} parent=1 // pred_region
      %s367 = ssub.s32 16, 16
      %368 = vsyncadd [#allocation9], %s367
      %371 = dma.smem_to_hbm [#allocation8], 16, %s7, [#allocation9]
    $region41: #{vae_forward.1} parent=1 // pred_fallthru
      _
    // Predicated region
    $region42: #{vae_forward.1} parent=1 // pred_check
      _
    $region43: #{vae_forward.1} parent=1 // pred_check_branch
      %373 = sbr.rel (0) target = $region45
    $region44: #{vae_forward.1} parent=1 // pred_region
      %374 = dma.done [#allocation4], 16
    $region45: #{vae_forward.1} parent=1 // pred_fallthru
      _
    // Predicated region
    $region46: #{vae_forward.1} parent=1 // pred_check
      _
    $region47: #{vae_forward.1} parent=1 // pred_check_branch
      %376 = sbr.rel (0) target = $region49
    $region48: #{vae_forward.1} parent=1 // pred_region
      %377 = dma.done [#allocation9], 16
    $region49: #{vae_forward.1} parent=1 // pred_fallthru
      _
    %378 = sfence
    %379 = vsyncpa [#allocation3], 1
    %380 = vsyncpa [#allocation6], 1
    %381 = vsyncpa [#allocation4], 1
    %382 = vsyncpa [#allocation9], 1

</llo_original>
